<compile_context>
chip_gen: v5e
topology: v5e:2x2
jax: 0.10.0
libtpu: 0.0.40
codegen_flags: <defaults>
</compile_context>

<pallas_src>
import jax
import jax.numpy as jnp
from jax.experimental import pallas as pl
from jax.experimental.pallas import tpu as pltpu


# ----------------------------------------------------------------------------
# Kernel: fused Haar forward + band split/sum.
#   x_ref  : (tm, 2*W)  rows = (n, c, i); lanes = [x[n,c,2i,:] | x[n,c,2i+1,:]]
#   cs_ref : (W, W2)    column-pair SUM matrix  (cs[2j, j] = cs[2j+1, j] = 1)
#   cd_ref : (W, W2)    column-pair DIFF matrix (cd[2j, j] = 1, cd[2j+1, j] = -1)
#   a_ref  : (tm, W2)   LL band ("a")
#   hvd_ref: (tm, W2)   LH + HL + HH  ("h + v + d")
# ----------------------------------------------------------------------------
def wfd_haar_kernel(x_ref, cs_ref, cd_ref, a_ref, hvd_ref):
    w = cs_ref.shape[0]                 # static: original width W
    x = x_ref[...]                      # (tm, 2W)
    xe = x[:, :w]                       # even input rows  x[n, c, 2i, :]
    xo = x[:, w:]                       # odd  input rows  x[n, c, 2i+1, :]

    row_sum = xe + xo                   # (tm, W)
    row_dif = xe - xo                   # (tm, W)

    cs = cs_ref[...]                    # (W, W2)
    cd = cd_ref[...]                    # (W, W2)

    band_a = jnp.dot(row_sum, cs, preferred_element_type=jnp.float32) * 0.25
    band_h = jnp.dot(row_sum, cd, preferred_element_type=jnp.float32) * 0.25
    band_v = jnp.dot(row_dif, cs, preferred_element_type=jnp.float32) * 0.25
    band_d = jnp.dot(row_dif, cd, preferred_element_type=jnp.float32) * 0.25

    a_ref[...] = band_a.astype(a_ref.dtype)
    hvd_ref[...] = (band_h + band_v + band_d).astype(hvd_ref.dtype)


def _column_pair_matrices(width, dtype):
    """Constant (W, W/2) matrices pairing adjacent columns: sum and diff."""
    w2 = width // 2
    col = jnp.arange(width)
    sum_mat = ((col[:, None] // 2) == jnp.arange(w2)[None, :]).astype(dtype)
    sign = (1.0 - 2.0 * (col % 2)).astype(dtype)        # +1 even col, -1 odd col
    diff_mat = sum_mat * sign[:, None]
    return sum_mat, diff_mat


def wfd_forward(x):
    """WFD.forward for the need=False configuration (dim == dim_in).

    x: (N, C, H, W) NCHW, H and W even.
    Returns (a, h + v + d), each of shape (N, C, H//2, W//2).
    """
    # TODO(synk): need=True variant would prepend a 1x1 conv (pure channel
    # matmul); not implemented here — the module is exercised with need=False.
    n, c, h, w = x.shape
    if h % 2 or w % 2:
        raise ValueError("Haar wavelet requires even spatial dims")
    h2, w2 = h // 2, w // 2

    # Free reshape: rows index (n, c, i); each row packs [even h-row | odd h-row].
    m = n * c * h2
    x_packed = x.reshape(m, 2 * w)

    cs, cd = _column_pair_matrices(w, x.dtype)

    # Largest row tile that keeps VMEM tiny; single grid step for small inputs,
    # multiple parallel steps (megacore-shardable) for large ones.
    tm = m if m <= 512 else 512
    grid = (pl.cdiv(m, tm),)

    a_flat, hvd_flat = pl.pallas_call(
        wfd_haar_kernel,
        out_shape=(
            jax.ShapeDtypeStruct((m, w2), x.dtype),
            jax.ShapeDtypeStruct((m, w2), x.dtype),
        ),
        grid_spec=pltpu.PrefetchScalarGridSpec(
            num_scalar_prefetch=0,
            grid=grid,
            in_specs=[
                pl.BlockSpec((tm, 2 * w), lambda i: (i, 0)),
                pl.BlockSpec((w, w2), lambda i: (0, 0)),
                pl.BlockSpec((w, w2), lambda i: (0, 0)),
            ],
            out_specs=[
                pl.BlockSpec((tm, w2), lambda i: (i, 0)),
                pl.BlockSpec((tm, w2), lambda i: (i, 0)),
            ],
        ),
        compiler_params=pltpu.CompilerParams(
            dimension_semantics=("parallel",),
        ),
    )(x_packed, cs, cd)

    a = a_flat.reshape(n, c, h2, w2)
    hvd = hvd_flat.reshape(n, c, h2, w2)
    return a, hvd


if __name__ == "__main__":
    key = jax.random.PRNGKey(0)
    N, C, H, W = 2, 4, 16, 16
    x = jax.random.normal(key, (N, C, H, W), dtype=jnp.float32)

    a, hvd = wfd_forward(x)
    a = jax.block_until_ready(a)
    hvd = jax.block_until_ready(hvd)

    # --- Plain-JAX reference replicating the PyTorch module exactly ----------
    base = jnp.ones((4, 1, 2, 2), jnp.float32)
    base = base.at[1, 0, 0, 1].set(-1.0).at[1, 0, 1, 1].set(-1.0)
    base = base.at[2, 0, 1, 0].set(-1.0).at[2, 0, 1, 1].set(-1.0)
    base = base.at[3, 0, 1, 0].set(-1.0).at[3, 0, 0, 1].set(-1.0)
    haar_w = jnp.concatenate([base] * C, axis=0)                  # (4C, 1, 2, 2)
    conv = jax.lax.conv_general_dilated(
        x, haar_w, window_strides=(2, 2), padding="VALID",
        dimension_numbers=("NCHW", "OIHW", "NCHW"),
        feature_group_count=C,
    ) / 4.0                                                       # (N, 4C, H/2, W/2)
    haar = jnp.swapaxes(conv.reshape(N, C, 4, H // 2, W // 2), 1, 2)
    haar = haar.reshape(N, 4 * C, H // 2, W // 2)
    a_ref = haar[:, :C]
    hvd_ref = haar[:, C:2 * C] + haar[:, 2 * C:3 * C] + haar[:, 3 * C:]

    assert a.shape == (N, C, H // 2, W // 2) and hvd.shape == a.shape
    assert jnp.allclose(a, a_ref, rtol=1e-5, atol=1e-5), "LL band mismatch"
    assert jnp.allclose(hvd, hvd_ref, rtol=1e-5, atol=1e-5), "h+v+d mismatch"

    print("KERNEL_OK")
</pallas_src>

<mosaic_0001>
module attributes {stable_mosaic.version = 11 : i64} {
  func.func @wfd_haar_kernel(%arg0: i32, %arg1: memref<64x32xf32, #tpu.memory_space<vmem>>, %arg2: memref<16x8xf32, #tpu.memory_space<vmem>>, %arg3: memref<16x8xf32, #tpu.memory_space<vmem>>, %arg4: memref<64x8xf32, #tpu.memory_space<vmem>>, %arg5: memref<64x8xf32, #tpu.memory_space<vmem>>) attributes {dimension_semantics = [#tpu.dimension_semantics<parallel>], iteration_bounds = array<i64: 1>, scalar_prefetch = 0 : i64, scratch_operands = 0 : i64, tpu.core_type = #tpu.core_type<tc>, window_params = [{transform_indices = @transform_0, window_bounds = array<i64: 64, 32>}, {pipeline_mode = #tpu.pipeline_mode<synchronous>, transform_indices = @transform_1, window_bounds = array<i64: 16, 8>}, {pipeline_mode = #tpu.pipeline_mode<synchronous>, transform_indices = @transform_2, window_bounds = array<i64: 16, 8>}, {transform_indices = @transform_3, window_bounds = array<i64: 64, 8>}, {transform_indices = @transform_4, window_bounds = array<i64: 64, 8>}]} {
    %c0 = arith.constant 0 : index
    %c0_0 = arith.constant 0 : index
    %0 = vector.load %arg1[%c0, %c0_0] : memref<64x32xf32, #tpu.memory_space<vmem>>, vector<64x32xf32>
    %1 = vector.extract_strided_slice %0 {offsets = [0, 0], sizes = [64, 16], strides = [1, 1]} : vector<64x32xf32> to vector<64x16xf32>
    %2 = vector.extract_strided_slice %0 {offsets = [0, 16], sizes = [64, 16], strides = [1, 1]} : vector<64x32xf32> to vector<64x16xf32>
    %3 = arith.addf %1, %2 : vector<64x16xf32>
    %4 = arith.subf %1, %2 : vector<64x16xf32>
    %c0_1 = arith.constant 0 : index
    %c0_2 = arith.constant 0 : index
    %5 = vector.load %arg2[%c0_1, %c0_2] : memref<16x8xf32, #tpu.memory_space<vmem>>, vector<16x8xf32>
    %c0_3 = arith.constant 0 : index
    %c0_4 = arith.constant 0 : index
    %6 = vector.load %arg3[%c0_3, %c0_4] : memref<16x8xf32, #tpu.memory_space<vmem>>, vector<16x8xf32>
    %cst = arith.constant dense<0.000000e+00> : vector<64x8xf32>
    %7 = tpu.matmul %3, %5, %cst {dimension_numbers = #tpu.dot_dimension_numbers<[1], [0], [0], [1], [0, 0, 1, 1], [], []>} : vector<64x16xf32>, vector<16x8xf32>, vector<64x8xf32> -> vector<64x8xf32>
    %cst_5 = arith.constant 2.500000e-01 : f32
    %8 = vector.broadcast %cst_5 : f32 to vector<64x8xf32>
    %9 = arith.mulf %7, %8 : vector<64x8xf32>
    %cst_6 = arith.constant dense<0.000000e+00> : vector<64x8xf32>
    %10 = tpu.matmul %3, %6, %cst_6 {dimension_numbers = #tpu.dot_dimension_numbers<[1], [0], [0], [1], [0, 0, 1, 1], [], []>} : vector<64x16xf32>, vector<16x8xf32>, vector<64x8xf32> -> vector<64x8xf32>
    %cst_7 = arith.constant 2.500000e-01 : f32
    %11 = vector.broadcast %cst_7 : f32 to vector<64x8xf32>
    %12 = arith.mulf %10, %11 : vector<64x8xf32>
    %cst_8 = arith.constant dense<0.000000e+00> : vector<64x8xf32>
    %13 = tpu.matmul %4, %5, %cst_8 {dimension_numbers = #tpu.dot_dimension_numbers<[1], [0], [0], [1], [0, 0, 1, 1], [], []>} : vector<64x16xf32>, vector<16x8xf32>, vector<64x8xf32> -> vector<64x8xf32>
    %cst_9 = arith.constant 2.500000e-01 : f32
    %14 = vector.broadcast %cst_9 : f32 to vector<64x8xf32>
    %15 = arith.mulf %13, %14 : vector<64x8xf32>
    %cst_10 = arith.constant dense<0.000000e+00> : vector<64x8xf32>
    %16 = tpu.matmul %4, %6, %cst_10 {dimension_numbers = #tpu.dot_dimension_numbers<[1], [0], [0], [1], [0, 0, 1, 1], [], []>} : vector<64x16xf32>, vector<16x8xf32>, vector<64x8xf32> -> vector<64x8xf32>
    %cst_11 = arith.constant 2.500000e-01 : f32
    %17 = vector.broadcast %cst_11 : f32 to vector<64x8xf32>
    %18 = arith.mulf %16, %17 : vector<64x8xf32>
    %c0_12 = arith.constant 0 : index
    %c0_13 = arith.constant 0 : index
    %19 = vector.load %arg4[%c0_12, %c0_13] : memref<64x8xf32, #tpu.memory_space<vmem>>, vector<64x8xf32>
    tpu.vector_store %arg4[%c0_12, %c0_13], %9 {strides = array<i32>} : memref<64x8xf32, #tpu.memory_space<vmem>>, vector<64x8xf32>,
    %20 = arith.addf %12, %15 : vector<64x8xf32>
    %21 = arith.addf %20, %18 : vector<64x8xf32>
    %c0_14 = arith.constant 0 : index
    %c0_15 = arith.constant 0 : index
    %22 = vector.load %arg5[%c0_14, %c0_15] : memref<64x8xf32, #tpu.memory_space<vmem>>, vector<64x8xf32>
    tpu.vector_store %arg5[%c0_14, %c0_15], %21 {strides = array<i32>} : memref<64x8xf32, #tpu.memory_space<vmem>>, vector<64x8xf32>,
    return
  }
  func.func @transform_0(%arg0: i32) -> (i32, i32) {
    %c0_i32 = arith.constant 0 : i32
    %c0_i32_0 = arith.constant 0 : i32
    return %arg0, %c0_i32 : i32, i32
  }
  func.func @transform_1(%arg0: i32) -> (i32, i32) {
    %c0_i32 = arith.constant 0 : i32
    %c0_i32_0 = arith.constant 0 : i32
    %c0_i32_1 = arith.constant 0 : i32
    return %c0_i32, %c0_i32_0 : i32, i32
  }
  func.func @transform_2(%arg0: i32) -> (i32, i32) {
    %c0_i32 = arith.constant 0 : i32
    %c0_i32_0 = arith.constant 0 : i32
    %c0_i32_1 = arith.constant 0 : i32
    return %c0_i32, %c0_i32_0 : i32, i32
  }
  func.func @transform_3(%arg0: i32) -> (i32, i32) {
    %c0_i32 = arith.constant 0 : i32
    %c0_i32_0 = arith.constant 0 : i32
    return %arg0, %c0_i32 : i32, i32
  }
  func.func @transform_4(%arg0: i32) -> (i32, i32) {
    %c0_i32 = arith.constant 0 : i32
    %c0_i32_0 = arith.constant 0 : i32
    return %arg0, %c0_i32 : i32, i32
  }
}

</mosaic_0001>

<llo_original>
// kernel: tpu_custom_call.1
$region0: #{tpu_custom_call.1}
  #allocation0 [shape = 'u32[]', space=smem, size = 0x4, offset = 0x4, fixed_abs, tag = 'smem constant byte address 0x4 - core index']
  #allocation1 [shape = 'u32[72,128]{1,0:T(1,128)}', space=vmem, size = 0x9000, scoped, tag = 'internal scratch']
  %s0 = inlined_call_operand.vmem [shape: f32[64,32], index: 0, kind: input, shape index: {}]
  %s1 = inlined_call_operand.vmem [shape: f32[16,8], index: 1, kind: input, shape index: {}]
  %s2 = inlined_call_operand.vmem [shape: f32[16,8], index: 2, kind: input, shape index: {}]
  %s3 = inlined_call_operand.vmem [shape: f32[64,8], index: 3, kind: output, shape index: {0}]
  %s4 = inlined_call_operand.vmem [shape: f32[64,8], index: 4, kind: output, shape index: {1}]
  %5 = xla_tuple %s3, %s4
  %s6 = sld [smem:[#allocation0]]
  $region30: #{tpu_custom_call.1} parent=0
    _
  %s8 = ssub.s32 1, %s6
  %s9 = scalar_select 0, %s8, %s6
  // Predicated region
  $region2: #{tpu_custom_call.1} parent=0 // pred_check
    _
  $region3: #{tpu_custom_call.1} parent=0 // pred_check_branch
    %11 = sbr.rel (0) target = $region5
  $region4: #{tpu_custom_call.1} parent=0 // pred_region
    _
  $region5: #{tpu_custom_call.1} parent=0 // pred_fallthru
    _
  // Predicated region
  $region6: #{tpu_custom_call.1} parent=0 // pred_check
    _
  $region7: #{tpu_custom_call.1} parent=0 // pred_check_branch
    %13 = sbr.rel (0) target = $region9
  $region8: #{tpu_custom_call.1} parent=0 // pred_region
    _
  $region9: #{tpu_custom_call.1} parent=0 // pred_fallthru
    _
  // Predicated region
  $region10: #{tpu_custom_call.1} parent=0 // pred_check
    _
  $region11: #{tpu_custom_call.1} parent=0 // pred_check_branch
    %15 = sbr.rel (0) target = $region13
  $region12: #{tpu_custom_call.1} parent=0 // pred_region
    _
  $region13: #{tpu_custom_call.1} parent=0 // pred_fallthru
    _
  %v16 = vld [vmem:[%s0] sm:$0xff]
  %v17 = vld [vmem:[%s0 + $0x8] sm:$0xff]
  %v18 = vld [vmem:[%s0 + $0x10] sm:$0xff]
  %v19 = vld [vmem:[%s0 + $0x18] sm:$0xff]
  %v20 = vld [vmem:[%s0 + $0x20] sm:$0xff]
  %v21 = vld [vmem:[%s0 + $0x28] sm:$0xff]
  %v22 = vld [vmem:[%s0 + $0x30] sm:$0xff]
  %v23 = vld [vmem:[%s0 + $0x38] sm:$0xff]
  %32 = vrot.lane.b32.xlu0 %v16, 112
  %v33 = vpop.permute.xlu0 %32
  %34 = vrot.lane.b32.xlu0 %v17, 112
  %v35 = vpop.permute.xlu0 %34
  %36 = vrot.lane.b32.xlu0 %v18, 112
  %v37 = vpop.permute.xlu0 %36
  %38 = vrot.lane.b32.xlu0 %v19, 112
  %v39 = vpop.permute.xlu0 %38
  %40 = vrot.lane.b32.xlu0 %v20, 112
  %v41 = vpop.permute.xlu0 %40
  %42 = vrot.lane.b32.xlu0 %v21, 112
  %v43 = vpop.permute.xlu0 %42
  %44 = vrot.lane.b32.xlu0 %v22, 112
  %v45 = vpop.permute.xlu0 %44
  %46 = vrot.lane.b32.xlu0 %v23, 112
  %v47 = vpop.permute.xlu0 %46
  %v56 = vadd.f32 %v16, %v33
  %v57 = vadd.f32 %v17, %v35
  %v58 = vadd.f32 %v18, %v37
  %v59 = vadd.f32 %v19, %v39
  %v60 = vadd.f32 %v20, %v41
  %v61 = vadd.f32 %v21, %v43
  %v62 = vadd.f32 %v22, %v45
  %v63 = vadd.f32 %v23, %v47
  %v64 = vsub.f32 %v16, %v33
  %v65 = vsub.f32 %v17, %v35
  %v66 = vsub.f32 %v18, %v37
  %v67 = vsub.f32 %v19, %v39
  %v68 = vsub.f32 %v20, %v41
  %v69 = vsub.f32 %v21, %v43
  %v70 = vsub.f32 %v22, %v45
  %v71 = vsub.f32 %v23, %v47
  %v72 = vld [vmem:[%s1] sm:$0xff]
  %v73 = vld [vmem:[%s1 + $0x8] sm:$0xff]
  %v74 = vld [vmem:[%s2] sm:$0xff]
  %v75 = vld [vmem:[%s2 + $0x8] sm:$0xff]
  %vm76 = vcmask 130048
  %v78 = vsel %vm76, %v56, 0
  %v81 = vsel %vm76, %v57, 0
  %v84 = vsel %vm76, %v58, 0
  %v87 = vsel %vm76, %v59, 0
  %v90 = vsel %vm76, %v60, 0
  %v93 = vsel %vm76, %v61, 0
  %v96 = vsel %vm76, %v62, 0
  %v99 = vsel %vm76, %v63, 0
  %101 = vmatpush.msra.mxu0 0.0
  %102 = vmatpush.msra.mxu0 0.0
  %103 = vmatpush.msra.mxu0 0.0
  %104 = vmatpush.msra.mxu0 0.0
  %105 = vmatpush.msra.mxu0 0.0
  %106 = vmatpush.msra.mxu0 0.0
  %107 = vmatpush.msra.mxu0 0.0
  %108 = vmatpush.msra.mxu0 0.0
  %109 = vmatpush.msra.mxu0 0.0
  %110 = vmatpush.msra.mxu0 0.0
  %111 = vmatpush.msra.mxu0 0.0
  %112 = vmatpush.msra.mxu0 0.0
  %113 = vmatpush.msra.mxu0 0.0
  %114 = vmatpush.msra.mxu0 0.0
  %115 = vmatpush.msra.mxu0 %v73
  %116 = vmatpush.msra.mxu0 %v72
  %117 = vmatmul.f32.gmra.mxu0 %v78
  %v118 = vpop.f32.mrf.mxu0
  %v119 = vadd.f32 0.0, %v118
  %120 = vmatmul.f32.gmra.mxu0 %v81
  %v121 = vpop.f32.mrf.mxu0
  %v122 = vadd.f32 0.0, %v121
  %123 = vmatmul.f32.gmra.mxu0 %v84
  %v124 = vpop.f32.mrf.mxu0
  %v125 = vadd.f32 0.0, %v124
  %126 = vmatmul.f32.gmra.mxu0 %v87
  %v127 = vpop.f32.mrf.mxu0
  %v128 = vadd.f32 0.0, %v127
  %129 = vmatmul.f32.gmra.mxu0 %v90
  %v130 = vpop.f32.mrf.mxu0
  %v131 = vadd.f32 0.0, %v130
  %132 = vmatmul.f32.gmra.mxu0 %v93
  %v133 = vpop.f32.mrf.mxu0
  %v134 = vadd.f32 0.0, %v133
  %135 = vmatmul.f32.gmra.mxu0 %v96
  %v136 = vpop.f32.mrf.mxu0
  %v137 = vadd.f32 0.0, %v136
  %138 = vmatmul.f32.gmra.mxu0 %v99
  %v139 = vpop.f32.mrf.mxu0
  %v140 = vadd.f32 0.0, %v139
  %141 = vdwg.mxu0
  %v142 = vmul.f32 %v119, 0.25
  %v143 = vmul.f32 %v122, 0.25
  %v144 = vmul.f32 %v125, 0.25
  %v145 = vmul.f32 %v128, 0.25
  %v146 = vmul.f32 %v131, 0.25
  %v147 = vmul.f32 %v134, 0.25
  %v148 = vmul.f32 %v137, 0.25
  %v149 = vmul.f32 %v140, 0.25
  %150 = vmatpush.msra.mxu0 0.0
  %151 = vmatpush.msra.mxu0 0.0
  %152 = vmatpush.msra.mxu0 0.0
  %153 = vmatpush.msra.mxu0 0.0
  %154 = vmatpush.msra.mxu0 0.0
  %155 = vmatpush.msra.mxu0 0.0
  %156 = vmatpush.msra.mxu0 0.0
  %157 = vmatpush.msra.mxu0 0.0
  %158 = vmatpush.msra.mxu0 0.0
  %159 = vmatpush.msra.mxu0 0.0
  %160 = vmatpush.msra.mxu0 0.0
  %161 = vmatpush.msra.mxu0 0.0
  %162 = vmatpush.msra.mxu0 0.0
  %163 = vmatpush.msra.mxu0 0.0
  %164 = vmatpush.msra.mxu0 %v75
  %165 = vmatpush.msra.mxu0 %v74
  %166 = vmatmul.f32.gmra.mxu0 %v78
  %v167 = vpop.f32.mrf.mxu0
  %v168 = vadd.f32 0.0, %v167
  %169 = vmatmul.f32.gmra.mxu0 %v81
  %v170 = vpop.f32.mrf.mxu0
  %v171 = vadd.f32 0.0, %v170
  %172 = vmatmul.f32.gmra.mxu0 %v84
  %v173 = vpop.f32.mrf.mxu0
  %v174 = vadd.f32 0.0, %v173
  %175 = vmatmul.f32.gmra.mxu0 %v87
  %v176 = vpop.f32.mrf.mxu0
  %v177 = vadd.f32 0.0, %v176
  %178 = vmatmul.f32.gmra.mxu0 %v90
  %v179 = vpop.f32.mrf.mxu0
  %v180 = vadd.f32 0.0, %v179
  %181 = vmatmul.f32.gmra.mxu0 %v93
  %v182 = vpop.f32.mrf.mxu0
  %v183 = vadd.f32 0.0, %v182
  %184 = vmatmul.f32.gmra.mxu0 %v96
  %v185 = vpop.f32.mrf.mxu0
  %v186 = vadd.f32 0.0, %v185
  %187 = vmatmul.f32.gmra.mxu0 %v99
  %v188 = vpop.f32.mrf.mxu0
  %v189 = vadd.f32 0.0, %v188
  %190 = vdwg.mxu0
  %v191 = vmul.f32 %v168, 0.25
  %v192 = vmul.f32 %v171, 0.25
  %v193 = vmul.f32 %v174, 0.25
  %v194 = vmul.f32 %v177, 0.25
  %v195 = vmul.f32 %v180, 0.25
  %v196 = vmul.f32 %v183, 0.25
  %v197 = vmul.f32 %v186, 0.25
  %v198 = vmul.f32 %v189, 0.25
  %v200 = vsel %vm76, %v64, 0
  %v203 = vsel %vm76, %v65, 0
  %v206 = vsel %vm76, %v66, 0
  %v209 = vsel %vm76, %v67, 0
  %v212 = vsel %vm76, %v68, 0
  %v215 = vsel %vm76, %v69, 0
  %v218 = vsel %vm76, %v70, 0
  %v221 = vsel %vm76, %v71, 0
  %223 = vmatpush.msra.mxu0 0.0
  %224 = vmatpush.msra.mxu0 0.0
  %225 = vmatpush.msra.mxu0 0.0
  %226 = vmatpush.msra.mxu0 0.0
  %227 = vmatpush.msra.mxu0 0.0
  %228 = vmatpush.msra.mxu0 0.0
  %229 = vmatpush.msra.mxu0 0.0
  %230 = vmatpush.msra.mxu0 0.0
  %231 = vmatpush.msra.mxu0 0.0
  %232 = vmatpush.msra.mxu0 0.0
  %233 = vmatpush.msra.mxu0 0.0
  %234 = vmatpush.msra.mxu0 0.0
  %235 = vmatpush.msra.mxu0 0.0
  %236 = vmatpush.msra.mxu0 0.0
  %237 = vmatpush.msra.mxu0 %v73
  %238 = vmatpush.msra.mxu0 %v72
  %239 = vmatmul.f32.gmra.mxu0 %v200
  %v240 = vpop.f32.mrf.mxu0
  %v241 = vadd.f32 0.0, %v240
  %242 = vmatmul.f32.gmra.mxu0 %v203
  %v243 = vpop.f32.mrf.mxu0
  %v244 = vadd.f32 0.0, %v243
  %245 = vmatmul.f32.gmra.mxu0 %v206
  %v246 = vpop.f32.mrf.mxu0
  %v247 = vadd.f32 0.0, %v246
  %248 = vmatmul.f32.gmra.mxu0 %v209
  %v249 = vpop.f32.mrf.mxu0
  %v250 = vadd.f32 0.0, %v249
  %251 = vmatmul.f32.gmra.mxu0 %v212
  %v252 = vpop.f32.mrf.mxu0
  %v253 = vadd.f32 0.0, %v252
  %254 = vmatmul.f32.gmra.mxu0 %v215
  %v255 = vpop.f32.mrf.mxu0
  %v256 = vadd.f32 0.0, %v255
  %257 = vmatmul.f32.gmra.mxu0 %v218
  %v258 = vpop.f32.mrf.mxu0
  %v259 = vadd.f32 0.0, %v258
  %260 = vmatmul.f32.gmra.mxu0 %v221
  %v261 = vpop.f32.mrf.mxu0
  %v262 = vadd.f32 0.0, %v261
  %263 = vdwg.mxu0
  %v264 = vmul.f32 %v241, 0.25
  %v265 = vmul.f32 %v244, 0.25
  %v266 = vmul.f32 %v247, 0.25
  %v267 = vmul.f32 %v250, 0.25
  %v268 = vmul.f32 %v253, 0.25
  %v269 = vmul.f32 %v256, 0.25
  %v270 = vmul.f32 %v259, 0.25
  %v271 = vmul.f32 %v262, 0.25
  %272 = vmatpush.msra.mxu0 0.0
  %273 = vmatpush.msra.mxu0 0.0
  %274 = vmatpush.msra.mxu0 0.0
  %275 = vmatpush.msra.mxu0 0.0
  %276 = vmatpush.msra.mxu0 0.0
  %277 = vmatpush.msra.mxu0 0.0
  %278 = vmatpush.msra.mxu0 0.0
  %279 = vmatpush.msra.mxu0 0.0
  %280 = vmatpush.msra.mxu0 0.0
  %281 = vmatpush.msra.mxu0 0.0
  %282 = vmatpush.msra.mxu0 0.0
  %283 = vmatpush.msra.mxu0 0.0
  %284 = vmatpush.msra.mxu0 0.0
  %285 = vmatpush.msra.mxu0 0.0
  %286 = vmatpush.msra.mxu0 %v75
  %287 = vmatpush.msra.mxu0 %v74
  %288 = vmatmul.f32.gmra.mxu0 %v200
  %v289 = vpop.f32.mrf.mxu0
  %v290 = vadd.f32 0.0, %v289
  %291 = vmatmul.f32.gmra.mxu0 %v203
  %v292 = vpop.f32.mrf.mxu0
  %v293 = vadd.f32 0.0, %v292
  %294 = vmatmul.f32.gmra.mxu0 %v206
  %v295 = vpop.f32.mrf.mxu0
  %v296 = vadd.f32 0.0, %v295
  %297 = vmatmul.f32.gmra.mxu0 %v209
  %v298 = vpop.f32.mrf.mxu0
  %v299 = vadd.f32 0.0, %v298
  %300 = vmatmul.f32.gmra.mxu0 %v212
  %v301 = vpop.f32.mrf.mxu0
  %v302 = vadd.f32 0.0, %v301
  %303 = vmatmul.f32.gmra.mxu0 %v215
  %v304 = vpop.f32.mrf.mxu0
  %v305 = vadd.f32 0.0, %v304
  %306 = vmatmul.f32.gmra.mxu0 %v218
  %v307 = vpop.f32.mrf.mxu0
  %v308 = vadd.f32 0.0, %v307
  %309 = vmatmul.f32.gmra.mxu0 %v221
  %v310 = vpop.f32.mrf.mxu0
  %v311 = vadd.f32 0.0, %v310
  %312 = vdwg.mxu0
  %v313 = vmul.f32 %v290, 0.25
  %v314 = vmul.f32 %v293, 0.25
  %v315 = vmul.f32 %v296, 0.25
  %v316 = vmul.f32 %v299, 0.25
  %v317 = vmul.f32 %v302, 0.25
  %v318 = vmul.f32 %v305, 0.25
  %v319 = vmul.f32 %v308, 0.25
  %v320 = vmul.f32 %v311, 0.25
  %vm321 = vcmask 64512
  %322 = vst.msk [vmem:[%s3] sm:$0xff] %vm321, %v142
  %323 = vst.msk [vmem:[%s3 + $0x8] sm:$0xff] %vm321, %v143
  %324 = vst.msk [vmem:[%s3 + $0x10] sm:$0xff] %vm321, %v144
  %325 = vst.msk [vmem:[%s3 + $0x18] sm:$0xff] %vm321, %v145
  %326 = vst.msk [vmem:[%s3 + $0x20] sm:$0xff] %vm321, %v146
  %327 = vst.msk [vmem:[%s3 + $0x28] sm:$0xff] %vm321, %v147
  %328 = vst.msk [vmem:[%s3 + $0x30] sm:$0xff] %vm321, %v148
  %329 = vst.msk [vmem:[%s3 + $0x38] sm:$0xff] %vm321, %v149
  %v330 = vadd.f32 %v191, %v264
  %v331 = vadd.f32 %v192, %v265
  %v332 = vadd.f32 %v193, %v266
  %v333 = vadd.f32 %v194, %v267
  %v334 = vadd.f32 %v195, %v268
  %v335 = vadd.f32 %v196, %v269
  %v336 = vadd.f32 %v197, %v270
  %v337 = vadd.f32 %v198, %v271
  %v338 = vadd.f32 %v330, %v313
  %v339 = vadd.f32 %v331, %v314
  %v340 = vadd.f32 %v332, %v315
  %v341 = vadd.f32 %v333, %v316
  %v342 = vadd.f32 %v334, %v317
  %v343 = vadd.f32 %v335, %v318
  %v344 = vadd.f32 %v336, %v319
  %v345 = vadd.f32 %v337, %v320
  %346 = vst.msk [vmem:[%s4] sm:$0xff] %vm321, %v338
  %347 = vst.msk [vmem:[%s4 + $0x8] sm:$0xff] %vm321, %v339
  %348 = vst.msk [vmem:[%s4 + $0x10] sm:$0xff] %vm321, %v340
  %349 = vst.msk [vmem:[%s4 + $0x18] sm:$0xff] %vm321, %v341
  %350 = vst.msk [vmem:[%s4 + $0x20] sm:$0xff] %vm321, %v342
  %351 = vst.msk [vmem:[%s4 + $0x28] sm:$0xff] %vm321, %v343
  %352 = vst.msk [vmem:[%s4 + $0x30] sm:$0xff] %vm321, %v344
  %353 = vst.msk [vmem:[%s4 + $0x38] sm:$0xff] %vm321, %v345
  // Predicated region
  $region14: #{tpu_custom_call.1} parent=0 // pred_check
    _
  $region15: #{tpu_custom_call.1} parent=0 // pred_check_branch
    %355 = sbr.rel (0) target = $region17
  $region16: #{tpu_custom_call.1} parent=0 // pred_region
    _
  $region17: #{tpu_custom_call.1} parent=0 // pred_fallthru
    _
  // Predicated region
  $region18: #{tpu_custom_call.1} parent=0 // pred_check
    _
  $region19: #{tpu_custom_call.1} parent=0 // pred_check_branch
    %357 = sbr.rel (0) target = $region21
  $region20: #{tpu_custom_call.1} parent=0 // pred_region
    _
  $region21: #{tpu_custom_call.1} parent=0 // pred_fallthru
    _
  // Predicated region
  $region22: #{tpu_custom_call.1} parent=0 // pred_check
    _
  $region23: #{tpu_custom_call.1} parent=0 // pred_check_branch
    %359 = sbr.rel (0) target = $region25
  $region24: #{tpu_custom_call.1} parent=0 // pred_region
    _
  $region25: #{tpu_custom_call.1} parent=0 // pred_fallthru
    _
  // Predicated region
  $region26: #{tpu_custom_call.1} parent=0 // pred_check
    _
  $region27: #{tpu_custom_call.1} parent=0 // pred_check_branch
    %361 = sbr.rel (0) target = $region29
  $region28: #{tpu_custom_call.1} parent=0 // pred_region
    _
  $region29: #{tpu_custom_call.1} parent=0 // pred_fallthru
    _

</llo_original>
